<compile_context>
chip_gen: v7x
topology: tpu7x:2x2x1
jax: 0.10.0
libtpu: 0.0.40
codegen_flags: <defaults>
</compile_context>

<pallas_src>
import functools

import jax
import jax.numpy as jnp
from jax.experimental import pallas as pl
from jax.experimental.pallas import tpu as pltpu

EPSILON = 1e-3  # module __init__ arg


def _sobel_kernel(x_ref, o_ref, *, w, hw, hw_p, epsilon):
    """Block = (TB, HW_P); each sublane row is one full image, row-major,
    lane-padded from HW to HW_P (multiple of 128)."""
    x = x_ref[...].astype(jnp.float32)                       # (TB, HW_P)

    # Per-lane boundary masks over the flat index f = i*W + j (only the valid
    # region f < HW matters; padded lanes produce garbage that is sliced off
    # by the wrapper and never feeds back into valid lanes because every shift
    # into a valid lane is masked).  The 1/4 Sobel scale is folded into the
    # vertical masks (saves 2 full-block multiplies).
    # NOTE: multiply-by-0/1 float masks assume finite inputs (0*inf = NaN);
    # switch to jnp.where(mask, shifted, 0.) if inf/NaN robustness is needed.
    f = jax.lax.broadcasted_iota(jnp.int32, (1, hw_p), 1)
    col = f % w
    m_l = (col != 0).astype(jnp.float32)           # valid left  neighbour (j > 0)
    m_r = (col != w - 1).astype(jnp.float32)       # valid right neighbour (j < W-1)
    m_u = (f >= w).astype(jnp.float32)             # valid up    neighbour (i > 0)
    m_d = (f < hw - w).astype(jnp.float32)         # valid down  neighbour (i < H-1)
    m_u4 = m_u * 0.25                              # up mask with Sobel 1/4 folded in
    m_d4 = m_d * 0.25                              # down mask with Sobel 1/4 folded in

    def sh(a, s):
        # neighbour `s` flat positions to the "left": out[f] = a[f - s]
        # (static shift; wrap-around only reaches masked / padded lanes)
        return pltpu.roll(a, s % hw_p, axis=1)

    # --- avg_pool2d(3, stride=1, pad=1, count_include_pad=True), separable ---
    hx = sh(x, 1) * m_l + x + sh(x, -1) * m_r
    pool = (sh(hx, w) * m_u + hx + sh(hx, -w) * m_d) * (1.0 / 9.0)

    # --- Sobel (cross-correlation, pad=1) on the zero-padded pooled image ----
    # Kept as two zero-padded stages (not fused into one 5x5) to match the
    # PyTorch border semantics exactly.  lp/rp shared by grad_x and grad_y;
    # dx and sx are formed together so lp/rp/pool die early (less liveness).
    lp = sh(pool, 1) * m_l
    rp = sh(pool, -1) * m_r
    dx = lp - rp                                   # [1, 0, -1] horizontal pass
    sx = lp + 2.0 * pool + rp                      # [1, 2, 1]  horizontal pass
    gx = sh(dx, w) * m_u4 + 0.5 * dx + sh(dx, -w) * m_d4   # [1,2,1]^T /4 vertical
    g2 = gx * gx                                   # fold before building gy
    gy = sh(sx, w) * m_u4 - sh(sx, -w) * m_d4      # [1,0,-1]^T /4 vertical
    # TODO(synk): for large W (>=128) where VALU/XLU saturate on v7x, the
    # vertical passes could move to the idle MXU as banded-matrix matmuls.

    # sqrt goes to the EUP slot (separate from the VALU).
    o_ref[...] = jnp.sqrt(g2 + gy * gy + epsilon).astype(o_ref.dtype)


def _vmem_capacity_bytes():
    """Physical VMEM of the attached TPU; conservative (v7x) default if the
    query is unavailable."""
    try:
        return int(pltpu.get_tpu_info().vmem_capacity_bytes)
    except Exception:
        return 64 << 20


def _choose_block_rows(bc, hw_p, vmem_cap_bytes):
    """Images (sublane rows) per grid step for the (BC, HW_P) slab.

    Budget: 2x double-buffered in + out blocks plus a handful of live
    block-sized f32 temporaries must stay under the scoped VMEM limit
    (100 MiB on 128 MiB v5e/v6e, 48 MiB on 64 MiB v7x)."""
    big_vmem = vmem_cap_bytes >= (100 << 20)
    max_block_bytes = (6 << 20) if big_vmem else (3 << 20)
    if bc <= 8:
        return bc                          # block sublane dim == full array dim
    rows = max(8, (max_block_bytes // (hw_p * 4) // 8) * 8)
    # Keep >= ~4 grid steps where the problem allows it, so DMA double-
    # buffering has something to overlap and both v7x TensorCores get a share
    # of the (parallel) image axis.
    rows_for_steps = max(8, (bc // 4 // 8) * 8)
    return min(rows, rows_for_steps)


def sobel_operator(x, epsilon=EPSILON):
    """x: (B, C, H, W) -> (B, C, H, W), same semantics as SobelOperator.forward."""
    b, c, h, w = x.shape
    bc, hw = b * c, h * w

    # Flatten each image onto one lane row; lane-pad to a multiple of 128 so
    # loads/stores are lane-dense (unmasked vst) for arbitrary image sizes.
    hw_p = ((hw + 127) // 128) * 128
    x2 = x.reshape(bc, hw)
    if hw_p != hw:
        x2 = jnp.pad(x2, ((0, 0), (0, hw_p - hw)))

    vmem_cap = _vmem_capacity_bytes()
    tb = _choose_block_rows(bc, hw_p, vmem_cap)
    # Pad the image-batch dim to a block multiple: every step's stores stay
    # unmasked and the last block is never partial.
    bc_p = ((bc + tb - 1) // tb) * tb
    if bc_p != bc:
        x2 = jnp.pad(x2, ((0, bc_p - bc), (0, 0)))
    grid = (bc_p // tb,)

    vmem_limit = (100 << 20) if vmem_cap >= (100 << 20) else (48 << 20)
    itemsize = jnp.dtype(x.dtype).itemsize

    out = pl.pallas_call(
        functools.partial(_sobel_kernel, w=w, hw=hw, hw_p=hw_p,
                          epsilon=float(epsilon)),
        # Output in the input dtype: no extra f32 writeback + XLA cast pass.
        out_shape=jax.ShapeDtypeStruct((bc_p, hw_p), x.dtype),
        grid_spec=pltpu.PrefetchScalarGridSpec(
            num_scalar_prefetch=0,
            grid=grid,
            in_specs=[pl.BlockSpec((tb, hw_p), lambda i: (i, 0))],
            out_specs=pl.BlockSpec((tb, hw_p), lambda i: (i, 0)),
        ),
        compiler_params=pltpu.CompilerParams(
            # TODO(synk): verify the 2-TC split on v7x; if "parallel" does not
            # shard the image axis, switch to pltpu.CORE_PARALLEL here.
            dimension_semantics=("parallel",),
            vmem_limit_bytes=vmem_limit,
        ),
        cost_estimate=pl.CostEstimate(          # mem-bound hint for XLA
            flops=32 * bc_p * hw_p,
            transcendentals=bc_p * hw_p,
            bytes_accessed=2 * bc_p * hw_p * itemsize,
        ),
    )(x2)

    if bc_p != bc or hw_p != hw:
        out = out[:bc, :hw]
    return out.reshape(b, c, h, w)


def _reference(x, epsilon=EPSILON):
    """Pure-JAX reference (conv_general_dilated) for a sanity check."""
    b, c, h, w = x.shape
    xi = x.reshape(b * c, 1, h, w).astype(jnp.float32)
    ones = jnp.ones((1, 1, 3, 3), jnp.float32) / 9.0
    kx = jnp.array([[1, 0, -1], [2, 0, -2], [1, 0, -1]], jnp.float32)[None, None] / 4.0
    ky = jnp.array([[1, 2, 1], [0, 0, 0], [-1, -2, -1]], jnp.float32)[None, None] / 4.0
    conv = lambda a, k: jax.lax.conv_general_dilated(
        a, k, (1, 1), ((1, 1), (1, 1)), dimension_numbers=("NCHW", "OIHW", "NCHW"))
    pooled = conv(xi, ones)
    gx = conv(pooled, kx)
    gy = conv(pooled, ky)
    return jnp.sqrt(gx ** 2 + gy ** 2 + epsilon).reshape(b, c, h, w)


if __name__ == "__main__":
    key = jax.random.PRNGKey(0)
    k0, k1 = jax.random.split(key)

    # Primary check: shape the module implies (B=2, C=4, H=W=16), f32.
    x = jax.random.normal(k0, (2, 4, 16, 16), dtype=jnp.float32)
    out = sobel_operator(x)
    jax.block_until_ready(out)
    ref = _reference(x)
    assert out.shape == (2, 4, 16, 16) and out.dtype == x.dtype
    assert jnp.allclose(out, ref, atol=2e-5, rtol=1e-5), "f32 mismatch vs reference"

    # Odd spatial size exercises the lane-padding path.
    x_odd = jax.random.normal(k1, (2, 3, 7, 10), dtype=jnp.float32)
    out_odd = sobel_operator(x_odd)
    jax.block_until_ready(out_odd)
    assert jnp.allclose(out_odd, _reference(x_odd), atol=2e-5, rtol=1e-5), \
        "odd-shape mismatch vs reference"

    # bf16 input: output stays bf16 (dtype-preserving writeback).
    x_bf = x.astype(jnp.bfloat16)
    out_bf = sobel_operator(x_bf)
    jax.block_until_ready(out_bf)
    assert out_bf.dtype == jnp.bfloat16
    ref_bf = _reference(x_bf.astype(jnp.float32)).astype(jnp.bfloat16)
    assert jnp.allclose(out_bf.astype(jnp.float32), ref_bf.astype(jnp.float32),
                        atol=3e-2, rtol=3e-2), "bf16 mismatch vs reference"

    print("KERNEL_OK")
</pallas_src>

<mosaic_0001>
module attributes {stable_mosaic.version = 11 : i64} {
  func.func @_sobel_kernel(%arg0: i32, %arg1: memref<8x256xf32, #tpu.memory_space<vmem>>, %arg2: memref<8x256xf32, #tpu.memory_space<vmem>>) attributes {dimension_semantics = [#tpu.dimension_semantics<parallel>], iteration_bounds = array<i64: 1>, scalar_prefetch = 0 : i64, scratch_operands = 0 : i64, tpu.core_type = #tpu.core_type<tc>, window_params = [{transform_indices = @transform_0, window_bounds = array<i64: 8, 256>}, {transform_indices = @transform_1, window_bounds = array<i64: 8, 256>}]} {
    %c0 = arith.constant 0 : index
    %c0_0 = arith.constant 0 : index
    %0 = vector.load %arg1[%c0, %c0_0] : memref<8x256xf32, #tpu.memory_space<vmem>>, vector<8x256xf32>
    %1 = tpu.iota {dimensions = array<i32: 1>} : vector<1x256xi32>
    %c16_i32 = arith.constant 16 : i32
    %c0_i32 = arith.constant 0 : i32
    %2 = arith.cmpi eq, %c16_i32, %c0_i32 : i32
    %c1_i32 = arith.constant 1 : i32
    %3 = arith.select %2, %c1_i32, %c16_i32 : i32
    %4 = vector.broadcast %3 : i32 to vector<1x256xi32>
    %5 = arith.remsi %1, %4 : vector<1x256xi32>
    %c0_i32_1 = arith.constant 0 : i32
    %6 = vector.broadcast %c0_i32_1 : i32 to vector<1x256xi32>
    %7 = arith.cmpi ne, %5, %6 : vector<1x256xi32>
    %c0_i32_2 = arith.constant 0 : i32
    %8 = vector.broadcast %c0_i32_2 : i32 to vector<1x256xi32>
    %9 = arith.cmpi slt, %5, %8 : vector<1x256xi32>
    %c0_i32_3 = arith.constant 0 : i32
    %10 = arith.cmpi slt, %3, %c0_i32_3 : i32
    %11 = vector.broadcast %10 : i1 to vector<1x256xi1>
    %12 = vector.broadcast %11 : vector<1x256xi1> to vector<1x256xi1>
    %13 = arith.xori %9, %12 : vector<1x256xi1>
    %14 = arith.andi %13, %7 : vector<1x256xi1>
    %15 = vector.broadcast %3 : i32 to vector<1x256xi32>
    %16 = arith.addi %5, %15 : vector<1x256xi32>
    %17 = arith.select %14, %16, %5 : vector<1x256xi1>, vector<1x256xi32>
    %c0_i32_4 = arith.constant 0 : i32
    %18 = vector.broadcast %c0_i32_4 : i32 to vector<1x256xi32>
    %19 = arith.cmpi ne, %17, %18 : vector<1x256xi32>
    %20 = arith.extui %19 : vector<1x256xi1> to vector<1x256xi32>
    %21 = arith.sitofp %20 : vector<1x256xi32> to vector<1x256xf32>
    %c15_i32 = arith.constant 15 : i32
    %22 = vector.broadcast %c15_i32 : i32 to vector<1x256xi32>
    %23 = arith.cmpi ne, %17, %22 : vector<1x256xi32>
    %24 = arith.extui %23 : vector<1x256xi1> to vector<1x256xi32>
    %25 = arith.sitofp %24 : vector<1x256xi32> to vector<1x256xf32>
    %c16_i32_5 = arith.constant 16 : i32
    %26 = vector.broadcast %c16_i32_5 : i32 to vector<1x256xi32>
    %27 = arith.cmpi sge, %1, %26 : vector<1x256xi32>
    %28 = arith.extui %27 : vector<1x256xi1> to vector<1x256xi32>
    %29 = arith.sitofp %28 : vector<1x256xi32> to vector<1x256xf32>
    %c240_i32 = arith.constant 240 : i32
    %30 = vector.broadcast %c240_i32 : i32 to vector<1x256xi32>
    %31 = arith.cmpi slt, %1, %30 : vector<1x256xi32>
    %32 = arith.extui %31 : vector<1x256xi1> to vector<1x256xi32>
    %33 = arith.sitofp %32 : vector<1x256xi32> to vector<1x256xf32>
    %cst = arith.constant 2.500000e-01 : f32
    %34 = vector.broadcast %cst : f32 to vector<1x256xf32>
    %35 = arith.mulf %29, %34 : vector<1x256xf32>
    %cst_6 = arith.constant 2.500000e-01 : f32
    %36 = vector.broadcast %cst_6 : f32 to vector<1x256xf32>
    %37 = arith.mulf %33, %36 : vector<1x256xf32>
    %c1_i32_7 = arith.constant 1 : i32
    %38 = tpu.dynamic_rotate %0 by %c1_i32_7 dim 1 : vector<8x256xf32>, i32 -> vector<8x256xf32>
    %39 = vector.broadcast %21 : vector<1x256xf32> to vector<8x256xf32>
    %40 = arith.mulf %38, %39 : vector<8x256xf32>
    %41 = arith.addf %40, %0 : vector<8x256xf32>
    %c255_i32 = arith.constant 255 : i32
    %42 = tpu.dynamic_rotate %0 by %c255_i32 dim 1 : vector<8x256xf32>, i32 -> vector<8x256xf32>
    %43 = vector.broadcast %25 : vector<1x256xf32> to vector<8x256xf32>
    %44 = arith.mulf %42, %43 : vector<8x256xf32>
    %45 = arith.addf %41, %44 : vector<8x256xf32>
    %c16_i32_8 = arith.constant 16 : i32
    %46 = tpu.dynamic_rotate %45 by %c16_i32_8 dim 1 : vector<8x256xf32>, i32 -> vector<8x256xf32>
    %47 = vector.broadcast %29 : vector<1x256xf32> to vector<8x256xf32>
    %48 = arith.mulf %46, %47 : vector<8x256xf32>
    %49 = arith.addf %48, %45 : vector<8x256xf32>
    %c240_i32_9 = arith.constant 240 : i32
    %50 = tpu.dynamic_rotate %45 by %c240_i32_9 dim 1 : vector<8x256xf32>, i32 -> vector<8x256xf32>
    %51 = vector.broadcast %33 : vector<1x256xf32> to vector<8x256xf32>
    %52 = arith.mulf %50, %51 : vector<8x256xf32>
    %53 = arith.addf %49, %52 : vector<8x256xf32>
    %cst_10 = arith.constant 0.111111112 : f32
    %54 = vector.broadcast %cst_10 : f32 to vector<8x256xf32>
    %55 = arith.mulf %53, %54 : vector<8x256xf32>
    %c1_i32_11 = arith.constant 1 : i32
    %56 = tpu.dynamic_rotate %55 by %c1_i32_11 dim 1 : vector<8x256xf32>, i32 -> vector<8x256xf32>
    %57 = vector.broadcast %21 : vector<1x256xf32> to vector<8x256xf32>
    %58 = arith.mulf %56, %57 : vector<8x256xf32>
    %c255_i32_12 = arith.constant 255 : i32
    %59 = tpu.dynamic_rotate %55 by %c255_i32_12 dim 1 : vector<8x256xf32>, i32 -> vector<8x256xf32>
    %60 = vector.broadcast %25 : vector<1x256xf32> to vector<8x256xf32>
    %61 = arith.mulf %59, %60 : vector<8x256xf32>
    %62 = arith.subf %58, %61 : vector<8x256xf32>
    %cst_13 = arith.constant 2.000000e+00 : f32
    %63 = vector.broadcast %cst_13 : f32 to vector<8x256xf32>
    %64 = arith.mulf %63, %55 : vector<8x256xf32>
    %65 = arith.addf %58, %64 : vector<8x256xf32>
    %66 = arith.addf %65, %61 : vector<8x256xf32>
    %c16_i32_14 = arith.constant 16 : i32
    %67 = tpu.dynamic_rotate %62 by %c16_i32_14 dim 1 : vector<8x256xf32>, i32 -> vector<8x256xf32>
    %68 = vector.broadcast %35 : vector<1x256xf32> to vector<8x256xf32>
    %69 = arith.mulf %67, %68 : vector<8x256xf32>
    %cst_15 = arith.constant 5.000000e-01 : f32
    %70 = vector.broadcast %cst_15 : f32 to vector<8x256xf32>
    %71 = arith.mulf %70, %62 : vector<8x256xf32>
    %72 = arith.addf %69, %71 : vector<8x256xf32>
    %c240_i32_16 = arith.constant 240 : i32
    %73 = tpu.dynamic_rotate %62 by %c240_i32_16 dim 1 : vector<8x256xf32>, i32 -> vector<8x256xf32>
    %74 = vector.broadcast %37 : vector<1x256xf32> to vector<8x256xf32>
    %75 = arith.mulf %73, %74 : vector<8x256xf32>
    %76 = arith.addf %72, %75 : vector<8x256xf32>
    %77 = arith.mulf %76, %76 : vector<8x256xf32>
    %c16_i32_17 = arith.constant 16 : i32
    %78 = tpu.dynamic_rotate %66 by %c16_i32_17 dim 1 : vector<8x256xf32>, i32 -> vector<8x256xf32>
    %79 = vector.broadcast %35 : vector<1x256xf32> to vector<8x256xf32>
    %80 = arith.mulf %78, %79 : vector<8x256xf32>
    %c240_i32_18 = arith.constant 240 : i32
    %81 = tpu.dynamic_rotate %66 by %c240_i32_18 dim 1 : vector<8x256xf32>, i32 -> vector<8x256xf32>
    %82 = vector.broadcast %37 : vector<1x256xf32> to vector<8x256xf32>
    %83 = arith.mulf %81, %82 : vector<8x256xf32>
    %84 = arith.subf %80, %83 : vector<8x256xf32>
    %85 = arith.mulf %84, %84 : vector<8x256xf32>
    %86 = arith.addf %77, %85 : vector<8x256xf32>
    %cst_19 = arith.constant 1.000000e-03 : f32
    %87 = vector.broadcast %cst_19 : f32 to vector<8x256xf32>
    %88 = arith.addf %86, %87 : vector<8x256xf32>
    %89 = math.sqrt %88 : vector<8x256xf32>
    %c0_20 = arith.constant 0 : index
    %c0_21 = arith.constant 0 : index
    %90 = vector.load %arg2[%c0_20, %c0_21] : memref<8x256xf32, #tpu.memory_space<vmem>>, vector<8x256xf32>
    tpu.vector_store %arg2[%c0_20, %c0_21], %89 {strides = array<i32>} : memref<8x256xf32, #tpu.memory_space<vmem>>, vector<8x256xf32>,
    return
  }
  func.func @transform_0(%arg0: i32) -> (i32, i32) {
    %c0_i32 = arith.constant 0 : i32
    %c0_i32_0 = arith.constant 0 : i32
    return %arg0, %c0_i32 : i32, i32
  }
  func.func @transform_1(%arg0: i32) -> (i32, i32) {
    %c0_i32 = arith.constant 0 : i32
    %c0_i32_0 = arith.constant 0 : i32
    return %arg0, %c0_i32 : i32, i32
  }
}

</mosaic_0001>

<llo_original>
// kernel: tpu_custom_call.1
$region0: #{tpu_custom_call.1}
  #allocation0 [shape = 'u32[]', space=smem, size = 0x4, offset = 0x4, fixed_abs, tag = 'smem constant byte address 0x4 - core index']
  #allocation1 [shape = 'u32[144,128]{1,0:T(1,128)}', space=vmem, size = 0x12000, scoped, tag = 'internal scratch']
  %s0 = inlined_call_operand.hbm [shape: f32[8,256], index: 0, kind: input, shape index: {}]
  %s1 = inlined_call_operand.hbm [shape: f32[8,256], index: 1, kind: output, shape index: {}]
  %s2 = sld [smem:[#allocation0]]
  $region18: #{tpu_custom_call.1} parent=0
    _
  %s4 = ssub.s32 1, %s2
  %s5 = scalar_select 0, %s4, %s2
  $region1: #{tpu_custom_call.1} parent=0
    #allocation2 [shape = 'u8[8192]{0}', space=vmem, size = 0x2000, scoped, tag = 'input window, operand 0, single buffered']
    #allocation3 [shape = 's32[1]{0}', space=sflag, size = 0x4, scoped, tag = 'scoped memory for tpu_custom_call.1']
    #allocation4 [shape = 's32[1]{0}', space=sflag, size = 0x4, scoped, tag = 'scoped memory for tpu_custom_call.1']
    #allocation5 [shape = 'u8[8192]{0}', space=vmem, size = 0x2000, scoped, tag = 'output window, operand 0, single buffered']
    %6 = vsyncpa [#allocation3], 0
    %7 = vsyncpa [#allocation4], 0
    // Predicated region
    $region2: #{tpu_custom_call.1} parent=1 // pred_check
      _
    $region3: #{tpu_custom_call.1} parent=1 // pred_check_branch
      %9 = sbr.rel (0) target = $region5
    $region4: #{tpu_custom_call.1} parent=1 // pred_region
      %s11 = ssub.s32 256, 256
      %12 = vsyncadd [#allocation3], %s11
      %s14 = sshll.u32 [#allocation2], 4
      %s15 = int_to_ptr.vmem [resolvable:$true] %s14
      %17 = dma.hbm_to_vmem [thread:$0]  %s0, 256, %s15, [#allocation3]
    $region5: #{tpu_custom_call.1} parent=1 // pred_fallthru
      _
    // Predicated region
    $region6: #{tpu_custom_call.1} parent=1 // pred_check
      _
    $region7: #{tpu_custom_call.1} parent=1 // pred_check_branch
      %19 = sbr.rel (0) target = $region9
    $region8: #{tpu_custom_call.1} parent=1 // pred_region
      %20 = dma.done [#allocation3], 256
    $region9: #{tpu_custom_call.1} parent=1 // pred_fallthru
      _
    %v21 = vld [vmem:[#allocation2] sm:$0xff]
    %v22 = vld [vmem:[#allocation2 + $0x8] sm:$0xff]
    %v23 = vlaneseq
    %v24 = vand.u32 %v23, 127
    %v25 = vadd.s32 %v24, 128
    %vm26 = vcmp.lt.s32.totalorder %v24, 0
    %v27 = vsub.s32 0, %v24
    %v28 = vsel %vm26, %v27, %v24
    %v29 = vshrl.u32 %v28, 4
    %v30 = vand.u32 %v28, 15
    %v31 = vsub.s32 0, %v30
    %v32 = vsel %vm26, %v31, %v30
    %vm33 = vcmp.lt.s32.totalorder %v25, 0
    %v34 = vsub.s32 0, %v25
    %v35 = vsel %vm33, %v34, %v25
    %v36 = vshrl.u32 %v35, 4
    %v37 = vand.u32 %v35, 15
    %v38 = vsub.s32 0, %v37
    %v39 = vsel %vm33, %v38, %v37
    %vm40 = vcmp.ne.s32.totalorder %v32, 0
    %vm41 = vcmp.ne.s32.totalorder %v39, 0
    %vm42 = vcmp.lt.s32.totalorder %v32, 0
    %vm43 = vcmp.lt.s32.totalorder %v39, 0
    %vm44 = vmand %vm42, %vm40
    %vm45 = vmand %vm43, %vm41
    %v46 = vadd.s32 %v32, 16
    %v47 = vadd.s32 %v39, 16
    %v48 = vsel %vm44, %v46, %v32
    %v49 = vsel %vm45, %v47, %v39
    %vm50 = vcmp.ne.s32.totalorder %v48, 0
    %vm51 = vcmp.ne.s32.totalorder %v49, 0
    %v52 = vsel %vm50, 1, 0
    %v53 = vsel %vm51, 1, 0
    %v54 = vcvt.s32.f32 %v52
    %v55 = vcvt.s32.f32 %v53
    %vm56 = vcmp.ne.s32.totalorder %v48, 15
    %vm57 = vcmp.ne.s32.totalorder %v49, 15
    %v58 = vsel %vm56, 1, 0
    %v59 = vsel %vm57, 1, 0
    %v60 = vcvt.s32.f32 %v58
    %v61 = vcvt.s32.f32 %v59
    %vm62 = vcmp.ge.s32.totalorder %v24, 16
    %vm63 = vcmp.ge.s32.totalorder %v25, 16
    %v64 = vsel %vm62, 1, 0
    %v65 = vsel %vm63, 1, 0
    %v66 = vcvt.s32.f32 %v64
    %v67 = vcvt.s32.f32 %v65
    %vm68 = vcmp.lt.s32.totalorder %v24, 240
    %vm69 = vcmp.lt.s32.totalorder %v25, 240
    %v70 = vsel %vm68, 1, 0
    %v71 = vsel %vm69, 1, 0
    %v72 = vcvt.s32.f32 %v70
    %v73 = vcvt.s32.f32 %v71
    %v74 = vmul.f32 %v66, 0.25
    %v75 = vmul.f32 %v67, 0.25
    %v76 = vmul.f32 %v72, 0.25
    %v77 = vmul.f32 %v73, 0.25
    %78 = vrot.lane.b32.xlu0 %v21, 1
    %v79 = vpop.permute.xlu0 %78
    %80 = vrot.lane.b32.xlu0 %v22, 1
    %v81 = vpop.permute.xlu0 %80
    %vm82 = vcmp.lt.s32.totalorder %v24, 1
    %v83 = vsel %vm82, %v79, %v81
    %v84 = vsel %vm82, %v81, %v79
    %v85 = vmul.f32 %v84, %v54
    %v86 = vmul.f32 %v83, %v55
    %v87 = vadd.f32 %v85, %v21
    %v88 = vadd.f32 %v86, %v22
    %89 = vrot.lane.b32.xlu0 %v21, 127
    %v90 = vpop.permute.xlu0 %89
    %91 = vrot.lane.b32.xlu0 %v22, 127
    %v92 = vpop.permute.xlu0 %91
    %vm93 = vcmp.lt.s32.totalorder %v24, 127
    %v94 = vsel %vm93, %v90, %v92
    %v95 = vsel %vm93, %v92, %v90
    %v96 = vmul.f32 %v94, %v60
    %v97 = vmul.f32 %v95, %v61
    %v98 = vadd.f32 %v87, %v96
    %v99 = vadd.f32 %v88, %v97
    %100 = vrot.lane.b32.xlu0 %v98, 16
    %v101 = vpop.permute.xlu0 %100
    %102 = vrot.lane.b32.xlu0 %v99, 16
    %v103 = vpop.permute.xlu0 %102
    %vm104 = vcmp.lt.s32.totalorder %v24, 16
    %v105 = vsel %vm104, %v101, %v103
    %v106 = vsel %vm104, %v103, %v101
    %v107 = vmul.f32 %v106, %v66
    %v108 = vmul.f32 %v105, %v67
    %v109 = vadd.f32 %v107, %v98
    %v110 = vadd.f32 %v108, %v99
    %111 = vrot.lane.b32.xlu0 %v98, 112
    %v112 = vpop.permute.xlu0 %111
    %113 = vrot.lane.b32.xlu0 %v99, 112
    %v114 = vpop.permute.xlu0 %113
    %vm115 = vcmp.lt.s32.totalorder %v24, 112
    %v116 = vsel %vm115, %v112, %v114
    %v117 = vsel %vm115, %v114, %v112
    %v118 = vmul.f32 %v116, %v72
    %v119 = vmul.f32 %v117, %v73
    %v120 = vadd.f32 %v109, %v118
    %v121 = vadd.f32 %v110, %v119
    %v122 = vmul.f32 %v120, 0.11111111
    %v123 = vmul.f32 %v121, 0.11111111
    %124 = vrot.lane.b32.xlu0 %v122, 1
    %v125 = vpop.permute.xlu0 %124
    %126 = vrot.lane.b32.xlu0 %v123, 1
    %v127 = vpop.permute.xlu0 %126
    %v128 = vsel %vm82, %v125, %v127
    %v129 = vsel %vm82, %v127, %v125
    %v130 = vmul.f32 %v129, %v54
    %v131 = vmul.f32 %v128, %v55
    %132 = vrot.lane.b32.xlu0 %v122, 127
    %v133 = vpop.permute.xlu0 %132
    %134 = vrot.lane.b32.xlu0 %v123, 127
    %v135 = vpop.permute.xlu0 %134
    %v136 = vsel %vm93, %v133, %v135
    %v137 = vsel %vm93, %v135, %v133
    %v138 = vmul.f32 %v136, %v60
    %v139 = vmul.f32 %v137, %v61
    %v140 = vsub.f32 %v130, %v138
    %v141 = vsub.f32 %v131, %v139
    %v142 = vmul.f32 %v122, 2.0
    %v143 = vmul.f32 %v123, 2.0
    %v144 = vadd.f32 %v130, %v142
    %v145 = vadd.f32 %v131, %v143
    %v146 = vadd.f32 %v144, %v138
    %v147 = vadd.f32 %v145, %v139
    %148 = vrot.lane.b32.xlu0 %v140, 16
    %v149 = vpop.permute.xlu0 %148
    %150 = vrot.lane.b32.xlu0 %v141, 16
    %v151 = vpop.permute.xlu0 %150
    %v152 = vsel %vm104, %v149, %v151
    %v153 = vsel %vm104, %v151, %v149
    %v154 = vmul.f32 %v153, %v74
    %v155 = vmul.f32 %v152, %v75
    %v156 = vmul.f32 %v140, 0.5
    %v157 = vmul.f32 %v141, 0.5
    %v158 = vadd.f32 %v154, %v156
    %v159 = vadd.f32 %v155, %v157
    %160 = vrot.lane.b32.xlu0 %v140, 112
    %v161 = vpop.permute.xlu0 %160
    %162 = vrot.lane.b32.xlu0 %v141, 112
    %v163 = vpop.permute.xlu0 %162
    %v164 = vsel %vm115, %v161, %v163
    %v165 = vsel %vm115, %v163, %v161
    %v166 = vmul.f32 %v164, %v76
    %v167 = vmul.f32 %v165, %v77
    %v168 = vadd.f32 %v158, %v166
    %v169 = vadd.f32 %v159, %v167
    %v170 = vmul.f32 %v168, %v168
    %v171 = vmul.f32 %v169, %v169
    %172 = vrot.lane.b32.xlu0 %v146, 16
    %v173 = vpop.permute.xlu0 %172
    %174 = vrot.lane.b32.xlu0 %v147, 16
    %v175 = vpop.permute.xlu0 %174
    %v176 = vsel %vm104, %v173, %v175
    %v177 = vsel %vm104, %v175, %v173
    %v178 = vmul.f32 %v177, %v74
    %v179 = vmul.f32 %v176, %v75
    %180 = vrot.lane.b32.xlu0 %v146, 112
    %v181 = vpop.permute.xlu0 %180
    %182 = vrot.lane.b32.xlu0 %v147, 112
    %v183 = vpop.permute.xlu0 %182
    %v184 = vsel %vm115, %v181, %v183
    %v185 = vsel %vm115, %v183, %v181
    %v186 = vmul.f32 %v184, %v76
    %v187 = vmul.f32 %v185, %v77
    %v188 = vsub.f32 %v178, %v186
    %v189 = vsub.f32 %v179, %v187
    %v190 = vmul.f32 %v188, %v188
    %v191 = vmul.f32 %v189, %v189
    %v192 = vadd.f32 %v170, %v190
    %v193 = vadd.f32 %v171, %v191
    %v194 = vadd.f32 %v192, 0.001
    %v195 = vadd.f32 %v193, 0.001
    %v196 = vrsqrt.pop %v194
    %v197 = vmul.f32 %v194, %v196
    %vm198 = vcmp.eq.f32.partialorder %v194, inf
    %v199 = vsel %vm198, %v194, %v197
    %vm200 = vcmp.eq.f32.partialorder %v194, 0.0
    %v201 = vand.u32 %v194, 2147483648
    %v202 = vsel %vm200, %v201, %v199
    %v203 = vrsqrt.pop %v195
    %v204 = vmul.f32 %v195, %v203
    %vm205 = vcmp.eq.f32.partialorder %v195, inf
    %v206 = vsel %vm205, %v195, %v204
    %vm207 = vcmp.eq.f32.partialorder %v195, 0.0
    %v208 = vand.u32 %v195, 2147483648
    %v209 = vsel %vm207, %v208, %v206
    %210 = vst [vmem:[#allocation5] sm:$0xff] %v202
    %211 = vst [vmem:[#allocation5 + $0x8] sm:$0xff] %v209
    // Predicated region
    $region10: #{tpu_custom_call.1} parent=1 // pred_check
      _
    $region11: #{tpu_custom_call.1} parent=1 // pred_check_branch
      %213 = sbr.rel (0) target = $region13
    $region12: #{tpu_custom_call.1} parent=1 // pred_region
      %s215 = ssub.s32 256, 256
      %216 = vsyncadd [#allocation4], %s215
      %s218 = sshll.u32 [#allocation5], 4
      %s219 = int_to_ptr.vmem [resolvable:$true] %s218
      %221 = dma.vmem_to_hbm [thread:$0]  %s219, 256, %s1, [#allocation4]
    $region13: #{tpu_custom_call.1} parent=1 // pred_fallthru
      _
    // Predicated region
    $region14: #{tpu_custom_call.1} parent=1 // pred_check
      _
    $region15: #{tpu_custom_call.1} parent=1 // pred_check_branch
      %223 = sbr.rel (0) target = $region17
    $region16: #{tpu_custom_call.1} parent=1 // pred_region
      %224 = dma.done [#allocation4], 256
    $region17: #{tpu_custom_call.1} parent=1 // pred_fallthru
      _
    %225 = vsyncpa [#allocation3], 1
    %226 = vsyncpa [#allocation4], 1

</llo_original>
